<compile_context>
chip_gen: v7x
topology: tpu7x:2x2x1
jax: 0.10.0
libtpu: 0.0.40
codegen_flags: <defaults>
</compile_context>

<pallas_src>
import functools

import jax
import jax.numpy as jnp
from jax.experimental import pallas as pl
from jax.experimental.pallas import tpu as pltpu


def _attended_state_kernel(x_ref, w_ref, b_ref, wa_ref, ba_ref, out_ref, *,
                           num_layers, activation):
    """One batch block per grid step.

    x_ref  : (BB, T, H) input sequences for this batch block
    w_ref  : (L, H, H)  MLP weights, pre-transposed to (in, out) layout
    b_ref  : (L, 1, H)  MLP biases
    wa_ref : (1, H)     attention Linear(H, 1) weight row
    ba_ref : (1, 1)     attention bias
    out_ref: (BB, H)    attended output (lane-dense store)
    """
    BB, T, H = x_ref.shape
    xb = x_ref[...]                                          # (BB, T, H)

    # ---- MLP: fold batch & time into one (BB*T, H) @ (H, H) matmul per layer ----
    h = xb.reshape(BB * T, H)
    for l in range(num_layers):
        h = jnp.dot(h.astype(w_ref.dtype), w_ref[l],
                    preferred_element_type=jnp.float32) + b_ref[l]
        if activation == "tanh":
            h = jnp.tanh(h)
        elif activation == "relu":
            h = jnp.maximum(h, 0.0)
        # activation is None -> identity.
        # TODO(synk): training-mode dropout (pltpu.prng_*) not implemented; eval-mode
        # dropout is the identity, which matches this forward pass at inference.

    # ---- attention scores: Linear(H, 1) as elementwise mul + lane reduce ----
    h3 = h.reshape(BB, T, H)
    s = jnp.sum(h3 * wa_ref[...], axis=-1) + ba_ref[0, 0]    # (BB, T)

    # ---- softmax over time (last axis) ----
    m = jnp.max(s, axis=-1, keepdims=True)                   # (BB, 1)
    p = jnp.exp(s - m)                                       # (BB, T)
    w = p / jnp.sum(p, axis=-1, keepdims=True)               # (BB, T)

    # ---- weighted sum of the ORIGINAL x over time as a batched MXU matmul ----
    out = jnp.einsum("bqt,bth->bqh", w[:, None, :], xb,
                     preferred_element_type=jnp.float32)     # (BB, 1, H)
    out_ref[...] = out[:, 0, :].astype(out_ref.dtype)


def pack_attended_state_params(params, *, compute_dtype=jnp.float32):
    """One-time packing of PyTorch-layout params into the kernel layout.

    Call ONCE (e.g. at model init), NOT in the per-step forward: the (out,in)->(in,out)
    transposes / stacking would otherwise run as extra XLA copies through HBM on every
    forward call before the kernel launches.
    """
    mlp = params["mlp"]                        # list of (W:(H,H) torch layout, b:(H,))
    wa, ba = params["att"]                     # (1, H), (1,)
    L = len(mlp)
    assert L >= 1  # TODO(synk): num_of_layers == 0 (identity MLP) path not wired here.
    H = mlp[0][0].shape[0]
    w_stack = jnp.stack([w.T for w, _ in mlp], axis=0).astype(compute_dtype)       # (L,H,H)
    b_stack = jnp.stack([b.reshape(1, H) for _, b in mlp], 0).astype(compute_dtype)  # (L,1,H)
    return {
        "w_stack": w_stack,
        "b_stack": b_stack,
        "wa": wa.reshape(1, H).astype(compute_dtype),
        "ba": ba.reshape(1, 1).astype(jnp.float32),
    }


def attended_state_forward(x, packed, *, activation=None, num_batch_blocks=1):
    """AttendedState.forward: x (B, T, H) -> (B, H).

    num_batch_blocks: 1 on v5e/v6e (single TensorCore); 2 on v7x so its two
    TensorCores can split the batch (each grid step handles B // num_batch_blocks rows).
    """
    B, T, H = x.shape
    w_stack = packed["w_stack"]
    b_stack = packed["b_stack"]
    wa = packed["wa"]
    ba = packed["ba"]
    L = w_stack.shape[0]
    assert B % num_batch_blocks == 0
    BB = B // num_batch_blocks

    kernel = functools.partial(_attended_state_kernel, num_layers=L,
                               activation=activation)

    return pl.pallas_call(
        kernel,
        out_shape=jax.ShapeDtypeStruct((B, H), jnp.float32),
        grid_spec=pltpu.PrefetchScalarGridSpec(
            num_scalar_prefetch=0,
            grid=(num_batch_blocks,),
            in_specs=[
                pl.BlockSpec((BB, T, H), lambda i: (i, 0, 0)),   # x: one batch block / step
                pl.BlockSpec((L, H, H), lambda i: (0, 0, 0)),    # MLP weights (resident)
                pl.BlockSpec((L, 1, H), lambda i: (0, 0, 0)),    # MLP biases (resident)
                pl.BlockSpec((1, H), lambda i: (0, 0)),          # attention weight row
                pl.BlockSpec((1, 1), lambda i: (0, 0)),          # attention bias
            ],
            out_specs=pl.BlockSpec((BB, H), lambda i: (i, 0)),
        ),
        compiler_params=pltpu.CompilerParams(
            # Independent batch blocks -> the 2 TCs on v7x can split the grid.
            dimension_semantics=("parallel",),
            # Demo footprint is <1 MiB; headroom for larger (L, H) configurations.
            vmem_limit_bytes=64 * 1024 * 1024,
        ),
    )(x, w_stack, b_stack, wa, ba)


# ---------------- pure-JAX reference (for correctness check) ----------------
def attended_state_ref(x, params, *, activation=None):
    h = x
    for (W, b) in params["mlp"]:
        h = jnp.matmul(h, W.T) + b
        if activation == "tanh":
            h = jnp.tanh(h)
        elif activation == "relu":
            h = jnp.maximum(h, 0.0)
    wa, ba = params["att"]
    scores = jnp.matmul(h, wa.T)[..., 0] + ba[0]       # (B, T)
    w = jax.nn.softmax(scores, axis=1)[..., None]      # (B, T, 1)
    return jnp.sum(w * x, axis=1)                      # (B, H)


# ---------------- parameter init (deterministic, PyTorch-style uniform) ----------------
def init_attended_state_params(key, hidden_size, num_of_layers):
    bound = 1.0 / jnp.sqrt(jnp.float32(hidden_size))
    keys = jax.random.split(key, 2 * num_of_layers + 2)
    mlp = []
    for i in range(num_of_layers):
        W = jax.random.uniform(keys[2 * i], (hidden_size, hidden_size),
                               jnp.float32, -bound, bound)
        b = jax.random.uniform(keys[2 * i + 1], (hidden_size,),
                               jnp.float32, -bound, bound)
        mlp.append((W, b))
    wa = jax.random.uniform(keys[-2], (1, hidden_size), jnp.float32, -bound, bound)
    ba = jax.random.uniform(keys[-1], (1,), jnp.float32, -bound, bound)
    return {"mlp": mlp, "att": (wa, ba)}


if __name__ == "__main__":
    # AttendedState(num_of_layers=2, hidden_size=128, dropout=0.0, activation=tanh)
    B, T, H, L = 4, 16, 128, 2
    activation = "tanh"

    key = jax.random.PRNGKey(0)
    kx, kp = jax.random.split(key)
    x = jax.random.normal(kx, (B, T, H), jnp.float32)
    params = init_attended_state_params(kp, H, L)

    # Pack once, outside the per-call hot path (transposed (in,out) layout, stacked).
    packed = pack_attended_state_params(params)

    fwd = jax.jit(functools.partial(attended_state_forward, activation=activation))
    out = jax.block_until_ready(fwd(x, packed))

    assert out.shape == (B, H), (out.shape, (B, H))

    ref = jax.block_until_ready(attended_state_ref(x, params, activation=activation))
    # Kernel uses default (single-pass bf16) MXU precision instead of HIGHEST, so the
    # tolerance is wider than the previous 1e-4.
    assert jnp.allclose(out, ref, atol=2e-2, rtol=2e-2), float(jnp.max(jnp.abs(out - ref)))

    print("KERNEL_OK")
</pallas_src>

<mosaic_0001>
module attributes {stable_mosaic.version = 11 : i64} {
  func.func @_attended_state_kernel(%arg0: i32, %arg1: memref<4x16x128xf32, #tpu.memory_space<vmem>>, %arg2: memref<2x128x128xf32, #tpu.memory_space<vmem>>, %arg3: memref<2x1x128xf32, #tpu.memory_space<vmem>>, %arg4: memref<1x128xf32, #tpu.memory_space<vmem>>, %arg5: memref<1x1xf32, #tpu.memory_space<vmem>>, %arg6: memref<4x128xf32, #tpu.memory_space<vmem>>) attributes {dimension_semantics = [#tpu.dimension_semantics<parallel>], iteration_bounds = array<i64: 1>, scalar_prefetch = 0 : i64, scratch_operands = 0 : i64, tpu.core_type = #tpu.core_type<tc>, window_params = [{transform_indices = @transform_0, window_bounds = array<i64: 4, 16, 128>}, {pipeline_mode = #tpu.pipeline_mode<synchronous>, transform_indices = @transform_1, window_bounds = array<i64: 2, 128, 128>}, {pipeline_mode = #tpu.pipeline_mode<synchronous>, transform_indices = @transform_2, window_bounds = array<i64: 2, 1, 128>}, {pipeline_mode = #tpu.pipeline_mode<synchronous>, transform_indices = @transform_3, window_bounds = array<i64: 1, 128>}, {pipeline_mode = #tpu.pipeline_mode<synchronous>, transform_indices = @transform_4, window_bounds = array<i64: 1, 1>}, {transform_indices = @transform_5, window_bounds = array<i64: 4, 128>}]} {
    %c0 = arith.constant 0 : index
    %c0_0 = arith.constant 0 : index
    %c0_1 = arith.constant 0 : index
    %0 = vector.load %arg1[%c0, %c0_0, %c0_1] : memref<4x16x128xf32, #tpu.memory_space<vmem>>, vector<4x16x128xf32>
    %1 = vector.shape_cast %0 : vector<4x16x128xf32> to vector<64x128xf32>
    %c0_2 = arith.constant 0 : index
    %c0_3 = arith.constant 0 : index
    %c0_4 = arith.constant 0 : index
    %2 = vector.load %arg2[%c0_2, %c0_3, %c0_4] : memref<2x128x128xf32, #tpu.memory_space<vmem>>, vector<1x128x128xf32>
    %3 = vector.shape_cast %2 : vector<1x128x128xf32> to vector<128x128xf32>
    %cst = arith.constant dense<0.000000e+00> : vector<64x128xf32>
    %4 = tpu.matmul %1, %3, %cst {dimension_numbers = #tpu.dot_dimension_numbers<[1], [0], [0], [1], [0, 0, 1, 1], [], []>} : vector<64x128xf32>, vector<128x128xf32>, vector<64x128xf32> -> vector<64x128xf32>
    %c0_5 = arith.constant 0 : index
    %c0_6 = arith.constant 0 : index
    %c0_7 = arith.constant 0 : index
    %5 = vector.load %arg3[%c0_5, %c0_6, %c0_7] : memref<2x1x128xf32, #tpu.memory_space<vmem>>, vector<1x1x128xf32>
    %6 = vector.shape_cast %5 : vector<1x1x128xf32> to vector<1x128xf32>
    %7 = vector.broadcast %6 : vector<1x128xf32> to vector<64x128xf32>
    %8 = arith.addf %4, %7 : vector<64x128xf32>
    %9 = math.tanh %8 : vector<64x128xf32>
    %c1 = arith.constant 1 : index
    %c0_8 = arith.constant 0 : index
    %c0_9 = arith.constant 0 : index
    %10 = vector.load %arg2[%c1, %c0_8, %c0_9] : memref<2x128x128xf32, #tpu.memory_space<vmem>>, vector<1x128x128xf32>
    %11 = vector.shape_cast %10 : vector<1x128x128xf32> to vector<128x128xf32>
    %cst_10 = arith.constant dense<0.000000e+00> : vector<64x128xf32>
    %12 = tpu.matmul %9, %11, %cst_10 {dimension_numbers = #tpu.dot_dimension_numbers<[1], [0], [0], [1], [0, 0, 1, 1], [], []>} : vector<64x128xf32>, vector<128x128xf32>, vector<64x128xf32> -> vector<64x128xf32>
    %c1_11 = arith.constant 1 : index
    %c0_12 = arith.constant 0 : index
    %c0_13 = arith.constant 0 : index
    %13 = vector.load %arg3[%c1_11, %c0_12, %c0_13] : memref<2x1x128xf32, #tpu.memory_space<vmem>>, vector<1x1x128xf32>
    %14 = vector.shape_cast %13 : vector<1x1x128xf32> to vector<1x128xf32>
    %15 = vector.broadcast %14 : vector<1x128xf32> to vector<64x128xf32>
    %16 = arith.addf %12, %15 : vector<64x128xf32>
    %17 = math.tanh %16 : vector<64x128xf32>
    %18 = vector.shape_cast %17 : vector<64x128xf32> to vector<4x16x128xf32>
    %c0_14 = arith.constant 0 : index
    %c0_15 = arith.constant 0 : index
    %19 = vector.load %arg4[%c0_14, %c0_15] : memref<1x128xf32, #tpu.memory_space<vmem>>, vector<1x128xf32>
    %20 = vector.shape_cast %19 : vector<1x128xf32> to vector<1x1x128xf32>
    %21 = vector.broadcast %20 : vector<1x1x128xf32> to vector<4x16x128xf32>
    %22 = arith.mulf %18, %21 : vector<4x16x128xf32>
    %cst_16 = arith.constant dense<0.000000e+00> : vector<4x16xf32>
    %23 = vector.multi_reduction <add>, %22, %cst_16 [2] : vector<4x16x128xf32> to vector<4x16xf32>
    %c0_17 = arith.constant 0 : index
    %c0_18 = arith.constant 0 : index
    %24 = vector.load %arg5[%c0_17, %c0_18] : memref<1x1xf32, #tpu.memory_space<vmem>>, vector<1x1xf32>
    %25 = vector.extract %24[0, 0] : f32 from vector<1x1xf32>
    %26 = vector.broadcast %25 : f32 to vector<4x16xf32>
    %27 = arith.addf %23, %26 : vector<4x16xf32>
    %cst_19 = arith.constant dense<0xFF800000> : vector<4xf32>
    %28 = vector.multi_reduction <maximumf>, %27, %cst_19 [1] : vector<4x16xf32> to vector<4xf32>
    %29 = vector.shape_cast %28 : vector<4xf32> to vector<4x1xf32>
    %30 = vector.broadcast %29 : vector<4x1xf32> to vector<4x16xf32>
    %31 = arith.subf %27, %30 : vector<4x16xf32>
    %32 = math.exp %31 : vector<4x16xf32>
    %cst_20 = arith.constant dense<0.000000e+00> : vector<4xf32>
    %33 = vector.multi_reduction <add>, %32, %cst_20 [1] : vector<4x16xf32> to vector<4xf32>
    %34 = vector.shape_cast %33 : vector<4xf32> to vector<4x1xf32>
    %35 = vector.broadcast %34 : vector<4x1xf32> to vector<4x16xf32>
    %36 = arith.divf %32, %35 : vector<4x16xf32>
    %37 = vector.shape_cast %36 : vector<4x16xf32> to vector<4x1x16xf32>
    "tpu.trace_start"() <{level = 10 : i32, message = "bqt,bth->bqh"}> : () -> ()
    %cst_21 = arith.constant dense<0.000000e+00> : vector<4x1x128xf32>
    %38 = tpu.matmul %37, %0, %cst_21 {dimension_numbers = #tpu.dot_dimension_numbers<[2], [1], [1], [2], [0, 0, 0, 1, 1, 2], [0], [0]>} : vector<4x1x16xf32>, vector<4x16x128xf32>, vector<4x1x128xf32> -> vector<4x1x128xf32>
    "tpu.trace_stop"() : () -> ()
    %39 = vector.shape_cast %38 : vector<4x1x128xf32> to vector<4x128xf32>
    %c0_22 = arith.constant 0 : index
    %c0_23 = arith.constant 0 : index
    %40 = vector.load %arg6[%c0_22, %c0_23] : memref<4x128xf32, #tpu.memory_space<vmem>>, vector<4x128xf32>
    tpu.vector_store %arg6[%c0_22, %c0_23], %39 {strides = array<i32>} : memref<4x128xf32, #tpu.memory_space<vmem>>, vector<4x128xf32>,
    return
  }
  func.func @transform_0(%arg0: i32) -> (i32, i32, i32) {
    %c0_i32 = arith.constant 0 : i32
    %c0_i32_0 = arith.constant 0 : i32
    %c0_i32_1 = arith.constant 0 : i32
    return %arg0, %c0_i32, %c0_i32_0 : i32, i32, i32
  }
  func.func @transform_1(%arg0: i32) -> (i32, i32, i32) {
    %c0_i32 = arith.constant 0 : i32
    %c0_i32_0 = arith.constant 0 : i32
    %c0_i32_1 = arith.constant 0 : i32
    %c0_i32_2 = arith.constant 0 : i32
    return %c0_i32, %c0_i32_0, %c0_i32_1 : i32, i32, i32
  }
  func.func @transform_2(%arg0: i32) -> (i32, i32, i32) {
    %c0_i32 = arith.constant 0 : i32
    %c0_i32_0 = arith.constant 0 : i32
    %c0_i32_1 = arith.constant 0 : i32
    %c0_i32_2 = arith.constant 0 : i32
    return %c0_i32, %c0_i32_0, %c0_i32_1 : i32, i32, i32
  }
  func.func @transform_3(%arg0: i32) -> (i32, i32) {
    %c0_i32 = arith.constant 0 : i32
    %c0_i32_0 = arith.constant 0 : i32
    %c0_i32_1 = arith.constant 0 : i32
    return %c0_i32, %c0_i32_0 : i32, i32
  }
  func.func @transform_4(%arg0: i32) -> (i32, i32) {
    %c0_i32 = arith.constant 0 : i32
    %c0_i32_0 = arith.constant 0 : i32
    %c0_i32_1 = arith.constant 0 : i32
    return %c0_i32, %c0_i32_0 : i32, i32
  }
  func.func @transform_5(%arg0: i32) -> (i32, i32) {
    %c0_i32 = arith.constant 0 : i32
    %c0_i32_0 = arith.constant 0 : i32
    return %arg0, %c0_i32 : i32, i32
  }
}

</mosaic_0001>

<llo_original>
// kernel: attended_state_forward.1
$region0: #{attended_state_forward.1}
  #allocation0 [shape = 'u32[]', space=smem, size = 0x4, offset = 0x4, fixed_abs, tag = 'smem constant byte address 0x4 - core index']
  #allocation1 [shape = 'u32[144,128]{1,0:T(1,128)}', space=vmem, size = 0x12000, scoped, tag = 'internal scratch']
  #allocation2 [shape = 'f32[1,1]{1,0:T(1,128)S(1)}', space=vmem, size = 0x200, scoped, tag = 'scoped memory for attended_state_forward.1']
  %s0 = inlined_call_operand.hbm [shape: f32[4,16,128], index: 0, kind: input, shape index: {}]
  %s1 = inlined_call_operand.hbm [shape: f32[2,128,128], index: 1, kind: input, shape index: {}]
  %s2 = inlined_call_operand.hbm [shape: f32[2,1,128], index: 2, kind: input, shape index: {}]
  %s3 = inlined_call_operand.hbm [shape: f32[1,128], index: 3, kind: input, shape index: {}]
  %s4 = inlined_call_operand.<no memory space> [shape: f32[1,1], index: 4, kind: input, shape index: {}]
  %s5 = inlined_call_operand.hbm [shape: f32[4,128], index: 5, kind: output, shape index: {}]
  %s6 = sld [smem:[#allocation0]]
  $region46: #{attended_state_forward.1} parent=0
    _
  %s8 = ssub.s32 1, %s6
  %s9 = scalar_select 0, %s8, %s6
  %v10 = vstv %s4
  %11 = vst [vmem:[#allocation2] sm:$0x1] %v10
  $region1: #{attended_state_forward.1} parent=0
    #allocation3 [shape = 'u8[32768]{0}', space=vmem, size = 0x8000, scoped, tag = 'input window, operand 0, single buffered']
    #allocation4 [shape = 's32[1]{0}', space=sflag, size = 0x4, scoped, tag = 'scoped memory for attended_state_forward.1']
    #allocation5 [shape = 's32[1]{0}', space=sflag, size = 0x4, scoped, tag = 'scoped memory for attended_state_forward.1']
    #allocation6 [shape = 'u8[131072]{0}', space=vmem, size = 0x20000, scoped, tag = 'input window, operand 1, single buffered']
    #allocation7 [shape = 's32[1]{0}', space=sflag, size = 0x4, scoped, tag = 'scoped memory for attended_state_forward.1']
    #allocation8 [shape = 'u8[1024]{0}', space=vmem, size = 0x400, scoped, tag = 'input window, operand 2, single buffered']
    #allocation9 [shape = 'u8[512]{0}', space=vmem, size = 0x400, scoped, tag = 'input window, operand 3, single buffered']
    #allocation10 [shape = 's32[1]{0}', space=sflag, size = 0x4, scoped, tag = 'scoped memory for attended_state_forward.1']
    #allocation11 [shape = 'u8[2048]{0}', space=vmem, size = 0x800, scoped, tag = 'output window, operand 0, single buffered']
    %12 = vsyncpa [#allocation4], 0
    %13 = vsyncpa [#allocation7], 0
    %14 = vsyncpa [#allocation10], 0
    %15 = vsyncpa [#allocation5], 0
    // Predicated region
    $region2: #{attended_state_forward.1} parent=1 // pred_check
      _
    $region3: #{attended_state_forward.1} parent=1 // pred_check_branch
      %17 = sbr.rel (0) target = $region5
    $region4: #{attended_state_forward.1} parent=1 // pred_region
      %s19 = ssub.s32 1024, 1024
      %20 = vsyncadd [#allocation4], %s19
      %s21 = sshll.u32 [#allocation3], 4
      %s22 = int_to_ptr.vmem [resolvable:$true] %s21
      %27 = dma.hbm_to_vmem [thread:$0]  %s0, 1024, %s22, [#allocation4], 128, 128, 8
    $region5: #{attended_state_forward.1} parent=1 // pred_fallthru
      _
    // Predicated region
    $region6: #{attended_state_forward.1} parent=1 // pred_check
      _
    $region7: #{attended_state_forward.1} parent=1 // pred_check_branch
      %29 = sbr.rel (0) target = $region9
    $region8: #{attended_state_forward.1} parent=1 // pred_region
      %s31 = ssub.s32 4096, 4096
      %32 = vsyncadd [#allocation7], %s31
      %s33 = sshll.u32 [#allocation6], 4
      %s34 = int_to_ptr.vmem [resolvable:$true] %s33
      %39 = dma.hbm_to_vmem [thread:$0]  %s1, 4096, %s34, [#allocation7], 128, 128, 8
    $region9: #{attended_state_forward.1} parent=1 // pred_fallthru
      _
    // Predicated region
    $region10: #{attended_state_forward.1} parent=1 // pred_check
      _
    $region11: #{attended_state_forward.1} parent=1 // pred_check_branch
      %41 = sbr.rel (0) target = $region13
    $region12: #{attended_state_forward.1} parent=1 // pred_region
      %s43 = ssub.s32 32, 32
      %44 = vsyncadd [#allocation7], %s43
      %s45 = sshll.u32 [#allocation8], 4
      %s46 = int_to_ptr.vmem [resolvable:$true] %s45
      %51 = dma.hbm_to_vmem [thread:$0]  %s2, 32, %s46, [#allocation7], 16, 16, 1
    $region13: #{attended_state_forward.1} parent=1 // pred_fallthru
      _
    // Predicated region
    $region14: #{attended_state_forward.1} parent=1 // pred_check
      _
    $region15: #{attended_state_forward.1} parent=1 // pred_check_branch
      %53 = sbr.rel (0) target = $region17
    $region16: #{attended_state_forward.1} parent=1 // pred_region
      %s55 = ssub.s32 16, 16
      %56 = vsyncadd [#allocation10], %s55
      %s58 = sshll.u32 [#allocation9], 4
      %s59 = int_to_ptr.vmem [resolvable:$true] %s58
      %61 = dma.hbm_to_vmem [thread:$0]  %s3, 16, %s59, [#allocation10]
    $region17: #{attended_state_forward.1} parent=1 // pred_fallthru
      _
    // Predicated region
    $region18: #{attended_state_forward.1} parent=1 // pred_check
      _
    $region19: #{attended_state_forward.1} parent=1 // pred_check_branch
      %63 = sbr.rel (0) target = $region21
    $region20: #{attended_state_forward.1} parent=1 // pred_region
      _
    $region21: #{attended_state_forward.1} parent=1 // pred_fallthru
      _
    // Predicated region
    $region22: #{attended_state_forward.1} parent=1 // pred_check
      _
    $region23: #{attended_state_forward.1} parent=1 // pred_check_branch
      %65 = sbr.rel (0) target = $region25
    $region24: #{attended_state_forward.1} parent=1 // pred_region
      %66 = dma.done [#allocation4], 1024
    $region25: #{attended_state_forward.1} parent=1 // pred_fallthru
      _
    // Predicated region
    $region26: #{attended_state_forward.1} parent=1 // pred_check
      _
    $region27: #{attended_state_forward.1} parent=1 // pred_check_branch
      %68 = sbr.rel (0) target = $region29
    $region28: #{attended_state_forward.1} parent=1 // pred_region
      %69 = dma.done [#allocation7], 4096
    $region29: #{attended_state_forward.1} parent=1 // pred_fallthru
      _
    // Predicated region
    $region30: #{attended_state_forward.1} parent=1 // pred_check
      _
    $region31: #{attended_state_forward.1} parent=1 // pred_check_branch
      %71 = sbr.rel (0) target = $region33
    $region32: #{attended_state_forward.1} parent=1 // pred_region
      %72 = dma.done [#allocation7], 32
    $region33: #{attended_state_forward.1} parent=1 // pred_fallthru
      _
    // Predicated region
    $region34: #{attended_state_forward.1} parent=1 // pred_check
      _
    $region35: #{attended_state_forward.1} parent=1 // pred_check_branch
      %74 = sbr.rel (0) target = $region37
    $region36: #{attended_state_forward.1} parent=1 // pred_region
      %75 = dma.done [#allocation10], 16
    $region37: #{attended_state_forward.1} parent=1 // pred_fallthru
      _
    %v76 = vld [vmem:[#allocation3] sm:$0xff]
    %v77 = vld [vmem:[#allocation3 + $0x8] sm:$0xff]
    %v78 = vld [vmem:[#allocation3 + $0x10] sm:$0xff]
    %v79 = vld [vmem:[#allocation3 + $0x18] sm:$0xff]
    %v80 = vld [vmem:[#allocation3 + $0x20] sm:$0xff]
    %v81 = vld [vmem:[#allocation3 + $0x28] sm:$0xff]
    %v82 = vld [vmem:[#allocation3 + $0x30] sm:$0xff]
    %v83 = vld [vmem:[#allocation3 + $0x38] sm:$0xff]
    %v84 = vld [vmem:[#allocation6] sm:$0xff]
    %v85 = vld [vmem:[#allocation6 + $0x8] sm:$0xff]
    %v86 = vld [vmem:[#allocation6 + $0x10] sm:$0xff]
    %v87 = vld [vmem:[#allocation6 + $0x18] sm:$0xff]
    %v88 = vld [vmem:[#allocation6 + $0x20] sm:$0xff]
    %v89 = vld [vmem:[#allocation6 + $0x28] sm:$0xff]
    %v90 = vld [vmem:[#allocation6 + $0x30] sm:$0xff]
    %v91 = vld [vmem:[#allocation6 + $0x38] sm:$0xff]
    %v92 = vld [vmem:[#allocation6 + $0x40] sm:$0xff]
    %v93 = vld [vmem:[#allocation6 + $0x48] sm:$0xff]
    %v94 = vld [vmem:[#allocation6 + $0x50] sm:$0xff]
    %v95 = vld [vmem:[#allocation6 + $0x58] sm:$0xff]
    %v96 = vld [vmem:[#allocation6 + $0x60] sm:$0xff]
    %v97 = vld [vmem:[#allocation6 + $0x68] sm:$0xff]
    %v98 = vld [vmem:[#allocation6 + $0x70] sm:$0xff]
    %v99 = vld [vmem:[#allocation6 + $0x78] sm:$0xff]
    %v100 = vld [vmem:[#allocation8] sm:$0x1]
    %v102 = vlaneseq
    %v103 = vshrl.u32 %v102, 7
    %v104 = vsub.s32 0, %v103
    %v105 = vrot.slane %v100, %v104
    %107 = vmatprep.subr.mxu0 0.0
    %108 = vmatpush1.msra.mxu0 %v84
    %109 = vmatprep.subr.mxu0 0.0
    %110 = vmatpush1.msra.mxu0 %v85
    %111 = vmatprep.subr.mxu0 0.0
    %112 = vmatpush1.msra.mxu0 %v86
    %113 = vmatprep.subr.mxu0 0.0
    %114 = vmatpush1.msra.mxu0 %v87
    %115 = vmatprep.subr.mxu0 0.0
    %116 = vmatpush1.msra.mxu0 %v88
    %117 = vmatprep.subr.mxu0 0.0
    %118 = vmatpush1.msra.mxu0 %v89
    %119 = vmatprep.subr.mxu0 0.0
    %120 = vmatpush1.msra.mxu0 %v90
    %121 = vmatprep.subr.mxu0 0.0
    %122 = vmatpush1.msra.mxu0 %v91
    %123 = vmatprep.subr.mxu0 0.0
    %124 = vmatpush1.msra.mxu0 %v92
    %125 = vmatprep.subr.mxu0 0.0
    %126 = vmatpush1.msra.mxu0 %v93
    %127 = vmatprep.subr.mxu0 0.0
    %128 = vmatpush1.msra.mxu0 %v94
    %129 = vmatprep.subr.mxu0 0.0
    %130 = vmatpush1.msra.mxu0 %v95
    %131 = vmatprep.subr.mxu0 0.0
    %132 = vmatpush1.msra.mxu0 %v96
    %133 = vmatprep.subr.mxu0 0.0
    %134 = vmatpush1.msra.mxu0 %v97
    %135 = vmatprep.subr.mxu0 0.0
    %136 = vmatpush1.msra.mxu0 %v98
    %137 = vmatprep.subr.mxu0 0.0
    %138 = vmatpush1.msra.mxu0 %v99
    %139 = vmatprep.subr.mxu0 0.0
    %140 = vmatpush1.msra.mxu0 0.0
    %141 = vmatprep.subr.mxu0 0.0
    %142 = vmatpush1.msra.mxu0 0.0
    %143 = vmatprep.subr.mxu0 0.0
    %144 = vmatpush1.msra.mxu0 0.0
    %145 = vmatprep.subr.mxu0 0.0
    %146 = vmatpush1.msra.mxu0 0.0
    %147 = vmatprep.subr.mxu0 0.0
    %148 = vmatpush1.msra.mxu0 0.0
    %149 = vmatprep.subr.mxu0 0.0
    %150 = vmatpush1.msra.mxu0 0.0
    %151 = vmatprep.subr.mxu0 0.0
    %152 = vmatpush1.msra.mxu0 0.0
    %153 = vmatprep.subr.mxu0 0.0
    %154 = vmatpush1.msra.mxu0 0.0
    %155 = vmatprep.subr.mxu0 0.0
    %156 = vmatpush1.msra.mxu0 0.0
    %157 = vmatprep.subr.mxu0 0.0
    %158 = vmatpush1.msra.mxu0 0.0
    %159 = vmatprep.subr.mxu0 0.0
    %160 = vmatpush1.msra.mxu0 0.0
    %161 = vmatprep.subr.mxu0 0.0
    %162 = vmatpush1.msra.mxu0 0.0
    %163 = vmatprep.subr.mxu0 0.0
    %164 = vmatpush1.msra.mxu0 0.0
    %165 = vmatprep.subr.mxu0 0.0
    %166 = vmatpush1.msra.mxu0 0.0
    %167 = vmatprep.subr.mxu0 0.0
    %168 = vmatpush1.msra.mxu0 0.0
    %169 = vmatprep.subr.mxu0 0.0
    %170 = vmatpush1.msra.mxu0 0.0
    %171 = vmatprep.mubr.f32.mxu0 0.0
    %172 = vmatmul.mubr.f32.gmra.mrb[0].mxu0 %v76
    %v173 = vpop.f32.mrb[0].mxu0
    %v174 = vadd.f32 %v105, %v173
    %v175 = vpop.f32.mrb[0].mxu0
    %176 = vmatprep.mubr.f32.mxu0 0.0
    %177 = vmatmul.mubr.f32.gmra.mrb[0].mxu0 %v77
    %v178 = vpop.f32.mrb[0].mxu0
    %v179 = vadd.f32 %v105, %v178
    %v180 = vpop.f32.mrb[0].mxu0
    %181 = vmatprep.mubr.f32.mxu0 0.0
    %182 = vmatmul.mubr.f32.gmra.mrb[0].mxu0 %v78
    %v183 = vpop.f32.mrb[0].mxu0
    %v184 = vadd.f32 %v105, %v183
    %v185 = vpop.f32.mrb[0].mxu0
    %186 = vmatprep.mubr.f32.mxu0 0.0
    %187 = vmatmul.mubr.f32.gmra.mrb[0].mxu0 %v79
    %v188 = vpop.f32.mrb[0].mxu0
    %v189 = vadd.f32 %v105, %v188
    %v190 = vpop.f32.mrb[0].mxu0
    %191 = vmatprep.mubr.f32.mxu0 0.0
    %192 = vmatmul.mubr.f32.gmra.mrb[0].mxu0 %v80
    %v193 = vpop.f32.mrb[0].mxu0
    %v194 = vadd.f32 %v105, %v193
    %v195 = vpop.f32.mrb[0].mxu0
    %196 = vmatprep.mubr.f32.mxu0 0.0
    %197 = vmatmul.mubr.f32.gmra.mrb[0].mxu0 %v81
    %v198 = vpop.f32.mrb[0].mxu0
    %v199 = vadd.f32 %v105, %v198
    %v200 = vpop.f32.mrb[0].mxu0
    %201 = vmatprep.mubr.f32.mxu0 0.0
    %202 = vmatmul.mubr.f32.gmra.mrb[0].mxu0 %v82
    %v203 = vpop.f32.mrb[0].mxu0
    %v204 = vadd.f32 %v105, %v203
    %v205 = vpop.f32.mrb[0].mxu0
    %206 = vmatprep.mubr.f32.mxu0 0.0
    %207 = vmatmul.mubr.f32.gmra.mrb[0].mxu0 %v83
    %v208 = vpop.f32.mrb[0].mxu0
    %v209 = vadd.f32 %v105, %v208
    %v210 = vpop.f32.mrb[0].mxu0
    %211 = vdwg.mxu0
    %v212 = vtanh.pop %v174
    %v213 = vtanh.pop %v179
    %v214 = vtanh.pop %v184
    %v215 = vtanh.pop %v189
    %v216 = vtanh.pop %v194
    %v217 = vtanh.pop %v199
    %v218 = vtanh.pop %v204
    %v219 = vtanh.pop %v209
    %s220 = scalar_lea.vmem [#allocation6], 128
    %v221 = vld [vmem:[%s220] sm:$0xff]
    %v222 = vld [vmem:[%s220 + $0x8] sm:$0xff]
    %v223 = vld [vmem:[%s220 + $0x10] sm:$0xff]
    %v224 = vld [vmem:[%s220 + $0x18] sm:$0xff]
    %v225 = vld [vmem:[%s220 + $0x20] sm:$0xff]
    %v226 = vld [vmem:[%s220 + $0x28] sm:$0xff]
    %v227 = vld [vmem:[%s220 + $0x30] sm:$0xff]
    %v228 = vld [vmem:[%s220 + $0x38] sm:$0xff]
    %v229 = vld [vmem:[%s220 + $0x40] sm:$0xff]
    %v230 = vld [vmem:[%s220 + $0x48] sm:$0xff]
    %v231 = vld [vmem:[%s220 + $0x50] sm:$0xff]
    %v232 = vld [vmem:[%s220 + $0x58] sm:$0xff]
    %v233 = vld [vmem:[%s220 + $0x60] sm:$0xff]
    %v234 = vld [vmem:[%s220 + $0x68] sm:$0xff]
    %v235 = vld [vmem:[%s220 + $0x70] sm:$0xff]
    %v236 = vld [vmem:[%s220 + $0x78] sm:$0xff]
    %s237 = scalar_lea.vmem [#allocation8], 1
    %v238 = vld [vmem:[%s237] sm:$0x1]
    %v240 = vlaneseq
    %v241 = vshrl.u32 %v240, 7
    %v242 = vsub.s32 0, %v241
    %v243 = vrot.slane %v238, %v242
    %245 = vmatprep.subr.mxu0 0.0
    %246 = vmatpush1.msra.mxu0 %v221
    %247 = vmatprep.subr.mxu0 0.0
    %248 = vmatpush1.msra.mxu0 %v222
    %249 = vmatprep.subr.mxu0 0.0
    %250 = vmatpush1.msra.mxu0 %v223
    %251 = vmatprep.subr.mxu0 0.0
    %252 = vmatpush1.msra.mxu0 %v224
    %253 = vmatprep.subr.mxu0 0.0
    %254 = vmatpush1.msra.mxu0 %v225
    %255 = vmatprep.subr.mxu0 0.0
    %256 = vmatpush1.msra.mxu0 %v226
    %257 = vmatprep.subr.mxu0 0.0
    %258 = vmatpush1.msra.mxu0 %v227
    %259 = vmatprep.subr.mxu0 0.0
    %260 = vmatpush1.msra.mxu0 %v228
    %261 = vmatprep.subr.mxu0 0.0
    %262 = vmatpush1.msra.mxu0 %v229
    %263 = vmatprep.subr.mxu0 0.0
    %264 = vmatpush1.msra.mxu0 %v230
    %265 = vmatprep.subr.mxu0 0.0
    %266 = vmatpush1.msra.mxu0 %v231
    %267 = vmatprep.subr.mxu0 0.0
    %268 = vmatpush1.msra.mxu0 %v232
    %269 = vmatprep.subr.mxu0 0.0
    %270 = vmatpush1.msra.mxu0 %v233
    %271 = vmatprep.subr.mxu0 0.0
    %272 = vmatpush1.msra.mxu0 %v234
    %273 = vmatprep.subr.mxu0 0.0
    %274 = vmatpush1.msra.mxu0 %v235
    %275 = vmatprep.subr.mxu0 0.0
    %276 = vmatpush1.msra.mxu0 %v236
    %277 = vmatprep.subr.mxu0 0.0
    %278 = vmatpush1.msra.mxu0 0.0
    %279 = vmatprep.subr.mxu0 0.0
    %280 = vmatpush1.msra.mxu0 0.0
    %281 = vmatprep.subr.mxu0 0.0
    %282 = vmatpush1.msra.mxu0 0.0
    %283 = vmatprep.subr.mxu0 0.0
    %284 = vmatpush1.msra.mxu0 0.0
    %285 = vmatprep.subr.mxu0 0.0
    %286 = vmatpush1.msra.mxu0 0.0
    %287 = vmatprep.subr.mxu0 0.0
    %288 = vmatpush1.msra.mxu0 0.0
    %289 = vmatprep.subr.mxu0 0.0
    %290 = vmatpush1.msra.mxu0 0.0
    %291 = vmatprep.subr.mxu0 0.0
    %292 = vmatpush1.msra.mxu0 0.0
    %293 = vmatprep.subr.mxu0 0.0
    %294 = vmatpush1.msra.mxu0 0.0
    %295 = vmatprep.subr.mxu0 0.0
    %296 = vmatpush1.msra.mxu0 0.0
    %297 = vmatprep.subr.mxu0 0.0
    %298 = vmatpush1.msra.mxu0 0.0
    %299 = vmatprep.subr.mxu0 0.0
    %300 = vmatpush1.msra.mxu0 0.0
    %301 = vmatprep.subr.mxu0 0.0
    %302 = vmatpush1.msra.mxu0 0.0
    %303 = vmatprep.subr.mxu0 0.0
    %304 = vmatpush1.msra.mxu0 0.0
    %305 = vmatprep.subr.mxu0 0.0
    %306 = vmatpush1.msra.mxu0 0.0
    %307 = vmatprep.subr.mxu0 0.0
    %308 = vmatpush1.msra.mxu0 0.0
    %309 = vmatprep.mubr.f32.mxu0 0.0
    %310 = vmatmul.mubr.f32.gmra.mrb[0].mxu0 %v212
    %v311 = vpop.f32.mrb[0].mxu0
    %v312 = vadd.f32 %v243, %v311
    %v313 = vpop.f32.mrb[0].mxu0
    %314 = vmatprep.mubr.f32.mxu0 0.0
    %315 = vmatmul.mubr.f32.gmra.mrb[0].mxu0 %v213
    %v316 = vpop.f32.mrb[0].mxu0
    %v317 = vadd.f32 %v243, %v316
    %v318 = vpop.f32.mrb[0].mxu0
    %319 = vmatprep.mubr.f32.mxu0 0.0
    %320 = vmatmul.mubr.f32.gmra.mrb[0].mxu0 %v214
    %v321 = vpop.f32.mrb[0].mxu0
    %v322 = vadd.f32 %v243, %v321
    %v323 = vpop.f32.mrb[0].mxu0
    %324 = vmatprep.mubr.f32.mxu0 0.0
    %325 = vmatmul.mubr.f32.gmra.mrb[0].mxu0 %v215
    %v326 = vpop.f32.mrb[0].mxu0
    %v327 = vadd.f32 %v243, %v326
    %v328 = vpop.f32.mrb[0].mxu0
    %329 = vmatprep.mubr.f32.mxu0 0.0
    %330 = vmatmul.mubr.f32.gmra.mrb[0].mxu0 %v216
    %v331 = vpop.f32.mrb[0].mxu0
    %v332 = vadd.f32 %v243, %v331
    %v333 = vpop.f32.mrb[0].mxu0
    %334 = vmatprep.mubr.f32.mxu0 0.0
    %335 = vmatmul.mubr.f32.gmra.mrb[0].mxu0 %v217
    %v336 = vpop.f32.mrb[0].mxu0
    %v337 = vadd.f32 %v243, %v336
    %v338 = vpop.f32.mrb[0].mxu0
    %339 = vmatprep.mubr.f32.mxu0 0.0
    %340 = vmatmul.mubr.f32.gmra.mrb[0].mxu0 %v218
    %v341 = vpop.f32.mrb[0].mxu0
    %v342 = vadd.f32 %v243, %v341
    %v343 = vpop.f32.mrb[0].mxu0
    %344 = vmatprep.mubr.f32.mxu0 0.0
    %345 = vmatmul.mubr.f32.gmra.mrb[0].mxu0 %v219
    %v346 = vpop.f32.mrb[0].mxu0
    %v347 = vadd.f32 %v243, %v346
    %v348 = vpop.f32.mrb[0].mxu0
    %349 = vdwg.mxu0
    %v350 = vtanh.pop %v312
    %v351 = vtanh.pop %v317
    %v352 = vtanh.pop %v322
    %v353 = vtanh.pop %v327
    %v354 = vtanh.pop %v332
    %v355 = vtanh.pop %v337
    %v356 = vtanh.pop %v342
    %v357 = vtanh.pop %v347
    %v358 = vld [vmem:[#allocation9] sm:$0x1]
    %v360 = vlaneseq
    %v361 = vshrl.u32 %v360, 7
    %v362 = vsub.s32 0, %v361
    %v363 = vrot.slane %v358, %v362
    %v365 = vmul.f32 %v350, %v363
    %v366 = vmul.f32 %v351, %v363
    %v367 = vmul.f32 %v352, %v363
    %v368 = vmul.f32 %v353, %v363
    %v369 = vmul.f32 %v354, %v363
    %v370 = vmul.f32 %v355, %v363
    %v371 = vmul.f32 %v356, %v363
    %v372 = vmul.f32 %v357, %v363
    %373 = vadd.xlane.f32.xlu0 %v365
    %v374 = vpop.xlane.xlu0 %373
    %375 = vadd.xlane.f32.xlu0 %v366
    %v376 = vpop.xlane.xlu0 %375
    %377 = vadd.xlane.f32.xlu0 %v367
    %v378 = vpop.xlane.xlu0 %377
    %379 = vadd.xlane.f32.xlu0 %v368
    %v380 = vpop.xlane.xlu0 %379
    %381 = vadd.xlane.f32.xlu0 %v369
    %v382 = vpop.xlane.xlu0 %381
    %383 = vadd.xlane.f32.xlu0 %v370
    %v384 = vpop.xlane.xlu0 %383
    %385 = vadd.xlane.f32.xlu0 %v371
    %v386 = vpop.xlane.xlu0 %385
    %387 = vadd.xlane.f32.xlu0 %v372
    %v388 = vpop.xlane.xlu0 %387
    %v389 = vld [vmem:[#allocation2] sm:$0x1]
    %s390 = vtos %v389
    %v391 = vstv %s390
    %v392 = vadd.f32 %v374, %v391
    %v393 = vadd.f32 %v376, %v391
    %v394 = vadd.f32 %v378, %v391
    %v395 = vadd.f32 %v380, %v391
    %v396 = vadd.f32 %v382, %v391
    %v397 = vadd.f32 %v384, %v391
    %v398 = vadd.f32 %v386, %v391
    %v399 = vadd.f32 %v388, %v391
    %v408 = vlaneseq
    %v409 = vand.u32 %v408, 127
    %v410 = vlaneseq
    %v411 = vshrl.u32 %v410, 7
    %v412 = vsub.s32 %v409, %v411
    %v413 = vrot.slane %v392, %v412
    %v414 = vadd.s32 %v409, 4294967288
    %v415 = vlaneseq
    %v416 = vshrl.u32 %v415, 7
    %v417 = vsub.s32 %v414, %v416
    %v418 = vrot.slane %v393, %v417
    %vm419 = vcmask 130112
    %v420 = vsel %vm419, %v418, %v413
    %v421 = vlaneseq
    %v422 = vshrl.u32 %v421, 7
    %v423 = vsub.s32 %v409, %v422
    %v424 = vrot.slane %v394, %v423
    %v425 = vlaneseq
    %v426 = vshrl.u32 %v425, 7
    %v427 = vsub.s32 %v414, %v426
    %v428 = vrot.slane %v395, %v427
    %v429 = vsel %vm419, %v428, %v424
    %v430 = vlaneseq
    %v431 = vshrl.u32 %v430, 7
    %v432 = vsub.s32 %v409, %v431
    %v433 = vrot.slane %v396, %v432
    %v434 = vlaneseq
    %v435 = vshrl.u32 %v434, 7
    %v436 = vsub.s32 %v414, %v435
    %v437 = vrot.slane %v397, %v436
    %v438 = vsel %vm419, %v437, %v433
    %v439 = vlaneseq
    %v440 = vshrl.u32 %v439, 7
    %v441 = vsub.s32 %v409, %v440
    %v442 = vrot.slane %v398, %v441
    %v443 = vlaneseq
    %v444 = vshrl.u32 %v443, 7
    %v445 = vsub.s32 %v414, %v444
    %v446 = vrot.slane %v399, %v445
    %v447 = vsel %vm419, %v446, %v442
    %vm448 = vcmask 1041409
    %v449 = vsel %vm448, %v429, %v420
    %vm450 = vcmask 1042434
    %v451 = vsel %vm450, %v438, %v449
    %vm452 = vcmask 1043459
    %v453 = vsel %vm452, %v447, %v451
    %vm455 = vcmask 125952
    %v456 = vsel %vm455, %v453, -inf
    %457 = vmax.xlane.f32.xlu0 %v456
    %v458 = vpop.xlane.xlu0 %457
    %v460 = vlaneseq
    %v461 = vshrl.u32 %v460, 7
    %v462 = vsub.s32 0, %v461
    %v463 = vrot.slane %v458, %v462
    %v464 = vlaneseq
    %v465 = vshrl.u32 %v464, 7
    %v466 = vsub.s32 1, %v465
    %v467 = vrot.slane %v458, %v466
    %v468 = vlaneseq
    %v469 = vshrl.u32 %v468, 7
    %v470 = vsub.s32 2, %v469
    %v471 = vrot.slane %v458, %v470
    %v472 = vlaneseq
    %v473 = vshrl.u32 %v472, 7
    %v474 = vsub.s32 3, %v473
    %v475 = vrot.slane %v458, %v474
    %v480 = vsub.f32 %v392, %v463
    %v481 = vsub.f32 %v393, %v463
    %v482 = vsub.f32 %v394, %v467
    %v483 = vsub.f32 %v395, %v467
    %v484 = vsub.f32 %v396, %v471
    %v485 = vsub.f32 %v397, %v471
    %v486 = vsub.f32 %v398, %v475
    %v487 = vsub.f32 %v399, %v475
    %v488 = vmul.f32 %v480, 1.442695
    %v489 = vpow.pop %v488
    %v490 = vmul.f32 %v481, 1.442695
    %v491 = vpow.pop %v490
    %v492 = vmul.f32 %v482, 1.442695
    %v493 = vpow.pop %v492
    %v494 = vmul.f32 %v483, 1.442695
    %v495 = vpow.pop %v494
    %v496 = vmul.f32 %v484, 1.442695
    %v497 = vpow.pop %v496
    %v498 = vmul.f32 %v485, 1.442695
    %v499 = vpow.pop %v498
    %v500 = vmul.f32 %v486, 1.442695
    %v501 = vpow.pop %v500
    %v502 = vmul.f32 %v487, 1.442695
    %v503 = vpow.pop %v502
    %512 = vset.pattern.permute.xlu0 0
    %513 = vperm.xlu0 %512, %v489
    %v514 = vpop.permute.xlu0 %513
    %515 = vset.pattern.permute.xlu0 0
    %516 = vperm.xlu0 %515, %v491
    %v517 = vpop.permute.xlu0 %516
    %518 = vset.pattern.permute.xlu0 0
    %519 = vperm.xlu0 %518, %v493
    %v520 = vpop.permute.xlu0 %519
    %521 = vset.pattern.permute.xlu0 0
    %522 = vperm.xlu0 %521, %v495
    %v523 = vpop.permute.xlu0 %522
    %524 = vset.pattern.permute.xlu0 0
    %525 = vperm.xlu0 %524, %v497
    %v526 = vpop.permute.xlu0 %525
    %527 = vset.pattern.permute.xlu0 0
    %528 = vperm.xlu0 %527, %v499
    %v529 = vpop.permute.xlu0 %528
    %530 = vset.pattern.permute.xlu0 0
    %531 = vperm.xlu0 %530, %v501
    %v532 = vpop.permute.xlu0 %531
    %533 = vset.pattern.permute.xlu0 0
    %534 = vperm.xlu0 %533, %v503
    %v535 = vpop.permute.xlu0 %534
    %v536 = vlaneseq
    %v537 = vshrl.u32 %v536, 7
    %v538 = vsub.s32 %v409, %v537
    %v539 = vrot.slane %v514, %v538
    %v540 = vlaneseq
    %v541 = vshrl.u32 %v540, 7
    %v542 = vsub.s32 %v414, %v541
    %v543 = vrot.slane %v517, %v542
    %v544 = vsel %vm419, %v543, %v539
    %v545 = vlaneseq
    %v546 = vshrl.u32 %v545, 7
    %v547 = vsub.s32 %v409, %v546
    %v548 = vrot.slane %v520, %v547
    %v549 = vlaneseq
    %v550 = vshrl.u32 %v549, 7
    %v551 = vsub.s32 %v414, %v550
    %v552 = vrot.slane %v523, %v551
    %v553 = vsel %vm419, %v552, %v548
    %v554 = vlaneseq
    %v555 = vshrl.u32 %v554, 7
    %v556 = vsub.s32 %v409, %v555
    %v557 = vrot.slane %v526, %v556
    %v558 = vlaneseq
    %v559 = vshrl.u32 %v558, 7
    %v560 = vsub.s32 %v414, %v559
    %v561 = vrot.slane %v529, %v560
    %v562 = vsel %vm419, %v561, %v557
    %v563 = vlaneseq
    %v564 = vshrl.u32 %v563, 7
    %v565 = vsub.s32 %v409, %v564
    %v566 = vrot.slane %v532, %v565
    %v567 = vlaneseq
    %v568 = vshrl.u32 %v567, 7
    %v569 = vsub.s32 %v414, %v568
    %v570 = vrot.slane %v535, %v569
    %v571 = vsel %vm419, %v570, %v566
    %v572 = vsel %vm448, %v553, %v544
    %v573 = vsel %vm450, %v562, %v572
    %v574 = vsel %vm452, %v571, %v573
    %v576 = vsel %vm455, %v574, 0.0
    %577 = vadd.xlane.f32.xlu0 %v576
    %v578 = vpop.xlane.xlu0 %577
    %v580 = vlaneseq
    %v581 = vshrl.u32 %v580, 7
    %v582 = vsub.s32 0, %v581
    %v583 = vrot.slane %v578, %v582
    %v584 = vlaneseq
    %v585 = vshrl.u32 %v584, 7
    %v586 = vsub.s32 1, %v585
    %v587 = vrot.slane %v578, %v586
    %v588 = vlaneseq
    %v589 = vshrl.u32 %v588, 7
    %v590 = vsub.s32 2, %v589
    %v591 = vrot.slane %v578, %v590
    %v592 = vlaneseq
    %v593 = vshrl.u32 %v592, 7
    %v594 = vsub.s32 3, %v593
    %v595 = vrot.slane %v578, %v594
    %v600 = vrcp.pop %v583
    %v601 = vmul.f32 %v489, %v600
    %v602 = vmul.f32 %v491, %v600
    %v603 = vrcp.pop %v587
    %v604 = vmul.f32 %v493, %v603
    %v605 = vmul.f32 %v495, %v603
    %v606 = vrcp.pop %v591
    %v607 = vmul.f32 %v497, %v606
    %v608 = vmul.f32 %v499, %v606
    %v609 = vrcp.pop %v595
    %v610 = vmul.f32 %v501, %v609
    %v611 = vmul.f32 %v503, %v609
    %614 = vset.pattern.permute.xlu0 0
    %615 = vperm.xlu0 %614, %v601
    %v616 = vpop.permute.xlu0 %615
    %617 = vset.pattern.permute.xlu0 0
    %618 = vperm.xlu0 %617, %v602
    %v619 = vpop.permute.xlu0 %618
    %v620 = vlaneseq
    %v621 = vshrl.u32 %v620, 7
    %v622 = vsub.s32 %v409, %v621
    %v623 = vrot.slane %v616, %v622
    %v624 = vlaneseq
    %v625 = vshrl.u32 %v624, 7
    %v626 = vsub.s32 %v414, %v625
    %v627 = vrot.slane %v619, %v626
    %v628 = vsel %vm419, %v627, %v623
    %vm629 = vcmask 130048
    %v630 = vsel %vm629, %v628, 0
    %632 = vmatprep.subr.mxu0 0.0
    %633 = vmatpush1.msra.mxu0 %v76
    %634 = vmatprep.subr.mxu0 0.0
    %635 = vmatpush1.msra.mxu0 %v77
    %636 = vmatprep.subr.mxu0 0.0
    %637 = vmatpush1.msra.mxu0 0.0
    %638 = vmatprep.subr.mxu0 0.0
    %639 = vmatpush1.msra.mxu0 0.0
    %640 = vmatprep.subr.mxu0 0.0
    %641 = vmatpush1.msra.mxu0 0.0
    %642 = vmatprep.subr.mxu0 0.0
    %643 = vmatpush1.msra.mxu0 0.0
    %644 = vmatprep.subr.mxu0 0.0
    %645 = vmatpush1.msra.mxu0 0.0
    %646 = vmatprep.subr.mxu0 0.0
    %647 = vmatpush1.msra.mxu0 0.0
    %648 = vmatprep.subr.mxu0 0.0
    %649 = vmatpush1.msra.mxu0 0.0
    %650 = vmatprep.subr.mxu0 0.0
    %651 = vmatpush1.msra.mxu0 0.0
    %652 = vmatprep.subr.mxu0 0.0
    %653 = vmatpush1.msra.mxu0 0.0
    %654 = vmatprep.subr.mxu0 0.0
    %655 = vmatpush1.msra.mxu0 0.0
    %656 = vmatprep.subr.mxu0 0.0
    %657 = vmatpush1.msra.mxu0 0.0
    %658 = vmatprep.subr.mxu0 0.0
    %659 = vmatpush1.msra.mxu0 0.0
    %660 = vmatprep.subr.mxu0 0.0
    %661 = vmatpush1.msra.mxu0 0.0
    %662 = vmatprep.subr.mxu0 0.0
    %663 = vmatpush1.msra.mxu0 0.0
    %664 = vmatprep.subr.mxu0 0.0
    %665 = vmatpush1.msra.mxu0 0.0
    %666 = vmatprep.subr.mxu0 0.0
    %667 = vmatpush1.msra.mxu0 0.0
    %668 = vmatprep.subr.mxu0 0.0
    %669 = vmatpush1.msra.mxu0 0.0
    %670 = vmatprep.subr.mxu0 0.0
    %671 = vmatpush1.msra.mxu0 0.0
    %672 = vmatprep.subr.mxu0 0.0
    %673 = vmatpush1.msra.mxu0 0.0
    %674 = vmatprep.subr.mxu0 0.0
    %675 = vmatpush1.msra.mxu0 0.0
    %676 = vmatprep.subr.mxu0 0.0
    %677 = vmatpush1.msra.mxu0 0.0
    %678 = vmatprep.subr.mxu0 0.0
    %679 = vmatpush1.msra.mxu0 0.0
    %680 = vmatprep.subr.mxu0 0.0
    %681 = vmatpush1.msra.mxu0 0.0
    %682 = vmatprep.subr.mxu0 0.0
    %683 = vmatpush1.msra.mxu0 0.0
    %684 = vmatprep.subr.mxu0 0.0
    %685 = vmatpush1.msra.mxu0 0.0
    %686 = vmatprep.subr.mxu0 0.0
    %687 = vmatpush1.msra.mxu0 0.0
    %688 = vmatprep.subr.mxu0 0.0
    %689 = vmatpush1.msra.mxu0 0.0
    %690 = vmatprep.subr.mxu0 0.0
    %691 = vmatpush1.msra.mxu0 0.0
    %692 = vmatprep.subr.mxu0 0.0
    %693 = vmatpush1.msra.mxu0 0.0
    %694 = vmatprep.subr.mxu0 0.0
    %695 = vmatpush1.msra.mxu0 0.0
    %696 = vmatprep.mubr.f32.mxu0 0.0
    %697 = vmatmul.mubr.f32.gmra.mrb[0].mxu0 %v630
    %v698 = vpop.f32.mrb[0].mxu0
    %v699 = vadd.f32 0.0, %v698
    %v700 = vpop.f32.mrb[0].mxu0
    %701 = vdwg.mxu0
    %704 = vset.pattern.permute.xlu0 0
    %705 = vperm.xlu0 %704, %v604
    %v706 = vpop.permute.xlu0 %705
    %707 = vset.pattern.permute.xlu0 0
    %708 = vperm.xlu0 %707, %v605
    %v709 = vpop.permute.xlu0 %708
    %v710 = vlaneseq
    %v711 = vshrl.u32 %v710, 7
    %v712 = vsub.s32 %v409, %v711
    %v713 = vrot.slane %v706, %v712
    %v714 = vlaneseq
    %v715 = vshrl.u32 %v714, 7
    %v716 = vsub.s32 %v414, %v715
    %v717 = vrot.slane %v709, %v716
    %v718 = vsel %vm419, %v717, %v713
    %v719 = vsel %vm629, %v718, 0
    %721 = vmatprep.subr.mxu0 0.0
    %722 = vmatpush1.msra.mxu0 %v78
    %723 = vmatprep.subr.mxu0 0.0
    %724 = vmatpush1.msra.mxu0 %v79
    %725 = vmatprep.subr.mxu0 0.0
    %726 = vmatpush1.msra.mxu0 0.0
    %727 = vmatprep.subr.mxu0 0.0
    %728 = vmatpush1.msra.mxu0 0.0
    %729 = vmatprep.subr.mxu0 0.0
    %730 = vmatpush1.msra.mxu0 0.0
    %731 = vmatprep.subr.mxu0 0.0
    %732 = vmatpush1.msra.mxu0 0.0
    %733 = vmatprep.subr.mxu0 0.0
    %734 = vmatpush1.msra.mxu0 0.0
    %735 = vmatprep.subr.mxu0 0.0
    %736 = vmatpush1.msra.mxu0 0.0
    %737 = vmatprep.subr.mxu0 0.0
    %738 = vmatpush1.msra.mxu0 0.0
    %739 = vmatprep.subr.mxu0 0.0
    %740 = vmatpush1.msra.mxu0 0.0
    %741 = vmatprep.subr.mxu0 0.0
    %742 = vmatpush1.msra.mxu0 0.0
    %743 = vmatprep.subr.mxu0 0.0
    %744 = vmatpush1.msra.mxu0 0.0
    %745 = vmatprep.subr.mxu0 0.0
    %746 = vmatpush1.msra.mxu0 0.0
    %747 = vmatprep.subr.mxu0 0.0
    %748 = vmatpush1.msra.mxu0 0.0
    %749 = vmatprep.subr.mxu0 0.0
    %750 = vmatpush1.msra.mxu0 0.0
    %751 = vmatprep.subr.mxu0 0.0
    %752 = vmatpush1.msra.mxu0 0.0
    %753 = vmatprep.subr.mxu0 0.0
    %754 = vmatpush1.msra.mxu0 0.0
    %755 = vmatprep.subr.mxu0 0.0
    %756 = vmatpush1.msra.mxu0 0.0
    %757 = vmatprep.subr.mxu0 0.0
    %758 = vmatpush1.msra.mxu0 0.0
    %759 = vmatprep.subr.mxu0 0.0
    %760 = vmatpush1.msra.mxu0 0.0
    %761 = vmatprep.subr.mxu0 0.0
    %762 = vmatpush1.msra.mxu0 0.0
    %763 = vmatprep.subr.mxu0 0.0
    %764 = vmatpush1.msra.mxu0 0.0
    %765 = vmatprep.subr.mxu0 0.0
    %766 = vmatpush1.msra.mxu0 0.0
    %767 = vmatprep.subr.mxu0 0.0
    %768 = vmatpush1.msra.mxu0 0.0
    %769 = vmatprep.subr.mxu0 0.0
    %770 = vmatpush1.msra.mxu0 0.0
    %771 = vmatprep.subr.mxu0 0.0
    %772 = vmatpush1.msra.mxu0 0.0
    %773 = vmatprep.subr.mxu0 0.0
    %774 = vmatpush1.msra.mxu0 0.0
    %775 = vmatprep.subr.mxu0 0.0
    %776 = vmatpush1.msra.mxu0 0.0
    %777 = vmatprep.subr.mxu0 0.0
    %778 = vmatpush1.msra.mxu0 0.0
    %779 = vmatprep.subr.mxu0 0.0
    %780 = vmatpush1.msra.mxu0 0.0
    %781 = vmatprep.subr.mxu0 0.0
    %782 = vmatpush1.msra.mxu0 0.0
    %783 = vmatprep.subr.mxu0 0.0
    %784 = vmatpush1.msra.mxu0 0.0
    %785 = vmatprep.mubr.f32.mxu0 0.0
    %786 = vmatmul.mubr.f32.gmra.mrb[0].mxu0 %v719
    %v787 = vpop.f32.mrb[0].mxu0
    %v788 = vadd.f32 0.0, %v787
    %v789 = vpop.f32.mrb[0].mxu0
    %790 = vdwg.mxu0
    %793 = vset.pattern.permute.xlu0 0
    %794 = vperm.xlu0 %793, %v607
    %v795 = vpop.permute.xlu0 %794
    %796 = vset.pattern.permute.xlu0 0
    %797 = vperm.xlu0 %796, %v608
    %v798 = vpop.permute.xlu0 %797
    %v799 = vlaneseq
    %v800 = vshrl.u32 %v799, 7
    %v801 = vsub.s32 %v409, %v800
    %v802 = vrot.slane %v795, %v801
    %v803 = vlaneseq
    %v804 = vshrl.u32 %v803, 7
    %v805 = vsub.s32 %v414, %v804
    %v806 = vrot.slane %v798, %v805
    %v807 = vsel %vm419, %v806, %v802
    %v808 = vsel %vm629, %v807, 0
    %810 = vmatprep.subr.mxu0 0.0
    %811 = vmatpush1.msra.mxu0 %v80
    %812 = vmatprep.subr.mxu0 0.0
    %813 = vmatpush1.msra.mxu0 %v81
    %814 = vmatprep.subr.mxu0 0.0
    %815 = vmatpush1.msra.mxu0 0.0
    %816 = vmatprep.subr.mxu0 0.0
    %817 = vmatpush1.msra.mxu0 0.0
    %818 = vmatprep.subr.mxu0 0.0
    %819 = vmatpush1.msra.mxu0 0.0
    %820 = vmatprep.subr.mxu0 0.0
    %821 = vmatpush1.msra.mxu0 0.0
    %822 = vmatprep.subr.mxu0 0.0
    %823 = vmatpush1.msra.mxu0 0.0
    %824 = vmatprep.subr.mxu0 0.0
    %825 = vmatpush1.msra.mxu0 0.0
    %826 = vmatprep.subr.mxu0 0.0
    %827 = vmatpush1.msra.mxu0 0.0
    %828 = vmatprep.subr.mxu0 0.0
    %829 = vmatpush1.msra.mxu0 0.0
    %830 = vmatprep.subr.mxu0 0.0
    %831 = vmatpush1.msra.mxu0 0.0
    %832 = vmatprep.subr.mxu0 0.0
    %833 = vmatpush1.msra.mxu0 0.0
    %834 = vmatprep.subr.mxu0 0.0
    %835 = vmatpush1.msra.mxu0 0.0
    %836 = vmatprep.subr.mxu0 0.0
    %837 = vmatpush1.msra.mxu0 0.0
    %838 = vmatprep.subr.mxu0 0.0
    %839 = vmatpush1.msra.mxu0 0.0
    %840 = vmatprep.subr.mxu0 0.0
    %841 = vmatpush1.msra.mxu0 0.0
    %842 = vmatprep.subr.mxu0 0.0
    %843 = vmatpush1.msra.mxu0 0.0
    %844 = vmatprep.subr.mxu0 0.0
    %845 = vmatpush1.msra.mxu0 0.0
    %846 = vmatprep.subr.mxu0 0.0
    %847 = vmatpush1.msra.mxu0 0.0
    %848 = vmatprep.subr.mxu0 0.0
    %849 = vmatpush1.msra.mxu0 0.0
    %850 = vmatprep.subr.mxu0 0.0
    %851 = vmatpush1.msra.mxu0 0.0
    %852 = vmatprep.subr.mxu0 0.0
    %853 = vmatpush1.msra.mxu0 0.0
    %854 = vmatprep.subr.mxu0 0.0
    %855 = vmatpush1.msra.mxu0 0.0
    %856 = vmatprep.subr.mxu0 0.0
    %857 = vmatpush1.msra.mxu0 0.0
    %858 = vmatprep.subr.mxu0 0.0
    %859 = vmatpush1.msra.mxu0 0.0
    %860 = vmatprep.subr.mxu0 0.0
    %861 = vmatpush1.msra.mxu0 0.0
    %862 = vmatprep.subr.mxu0 0.0
    %863 = vmatpush1.msra.mxu0 0.0
    %864 = vmatprep.subr.mxu0 0.0
    %865 = vmatpush1.msra.mxu0 0.0
    %866 = vmatprep.subr.mxu0 0.0
    %867 = vmatpush1.msra.mxu0 0.0
    %868 = vmatprep.subr.mxu0 0.0
    %869 = vmatpush1.msra.mxu0 0.0
    %870 = vmatprep.subr.mxu0 0.0
    %871 = vmatpush1.msra.mxu0 0.0
    %872 = vmatprep.subr.mxu0 0.0
    %873 = vmatpush1.msra.mxu0 0.0
    %874 = vmatprep.mubr.f32.mxu0 0.0
    %875 = vmatmul.mubr.f32.gmra.mrb[0].mxu0 %v808
    %v876 = vpop.f32.mrb[0].mxu0
    %v877 = vadd.f32 0.0, %v876
    %v878 = vpop.f32.mrb[0].mxu0
    %879 = vdwg.mxu0
    %882 = vset.pattern.permute.xlu0 0
    %883 = vperm.xlu0 %882, %v610
    %v884 = vpop.permute.xlu0 %883
    %885 = vset.pattern.permute.xlu0 0
    %886 = vperm.xlu0 %885, %v611
    %v887 = vpop.permute.xlu0 %886
    %v888 = vlaneseq
    %v889 = vshrl.u32 %v888, 7
    %v890 = vsub.s32 %v409, %v889
    %v891 = vrot.slane %v884, %v890
    %v892 = vlaneseq
    %v893 = vshrl.u32 %v892, 7
    %v894 = vsub.s32 %v414, %v893
    %v895 = vrot.slane %v887, %v894
    %v896 = vsel %vm419, %v895, %v891
    %v897 = vsel %vm629, %v896, 0
    %899 = vmatprep.subr.mxu0 0.0
    %900 = vmatpush1.msra.mxu0 %v82
    %901 = vmatprep.subr.mxu0 0.0
    %902 = vmatpush1.msra.mxu0 %v83
    %903 = vmatprep.subr.mxu0 0.0
    %904 = vmatpush1.msra.mxu0 0.0
    %905 = vmatprep.subr.mxu0 0.0
    %906 = vmatpush1.msra.mxu0 0.0
    %907 = vmatprep.subr.mxu0 0.0
    %908 = vmatpush1.msra.mxu0 0.0
    %909 = vmatprep.subr.mxu0 0.0
    %910 = vmatpush1.msra.mxu0 0.0
    %911 = vmatprep.subr.mxu0 0.0
    %912 = vmatpush1.msra.mxu0 0.0
    %913 = vmatprep.subr.mxu0 0.0
    %914 = vmatpush1.msra.mxu0 0.0
    %915 = vmatprep.subr.mxu0 0.0
    %916 = vmatpush1.msra.mxu0 0.0
    %917 = vmatprep.subr.mxu0 0.0
    %918 = vmatpush1.msra.mxu0 0.0
    %919 = vmatprep.subr.mxu0 0.0
    %920 = vmatpush1.msra.mxu0 0.0
    %921 = vmatprep.subr.mxu0 0.0
    %922 = vmatpush1.msra.mxu0 0.0
    %923 = vmatprep.subr.mxu0 0.0
    %924 = vmatpush1.msra.mxu0 0.0
    %925 = vmatprep.subr.mxu0 0.0
    %926 = vmatpush1.msra.mxu0 0.0
    %927 = vmatprep.subr.mxu0 0.0
    %928 = vmatpush1.msra.mxu0 0.0
    %929 = vmatprep.subr.mxu0 0.0
    %930 = vmatpush1.msra.mxu0 0.0
    %931 = vmatprep.subr.mxu0 0.0
    %932 = vmatpush1.msra.mxu0 0.0
    %933 = vmatprep.subr.mxu0 0.0
    %934 = vmatpush1.msra.mxu0 0.0
    %935 = vmatprep.subr.mxu0 0.0
    %936 = vmatpush1.msra.mxu0 0.0
    %937 = vmatprep.subr.mxu0 0.0
    %938 = vmatpush1.msra.mxu0 0.0
    %939 = vmatprep.subr.mxu0 0.0
    %940 = vmatpush1.msra.mxu0 0.0
    %941 = vmatprep.subr.mxu0 0.0
    %942 = vmatpush1.msra.mxu0 0.0
    %943 = vmatprep.subr.mxu0 0.0
    %944 = vmatpush1.msra.mxu0 0.0
    %945 = vmatprep.subr.mxu0 0.0
    %946 = vmatpush1.msra.mxu0 0.0
    %947 = vmatprep.subr.mxu0 0.0
    %948 = vmatpush1.msra.mxu0 0.0
    %949 = vmatprep.subr.mxu0 0.0
    %950 = vmatpush1.msra.mxu0 0.0
    %951 = vmatprep.subr.mxu0 0.0
    %952 = vmatpush1.msra.mxu0 0.0
    %953 = vmatprep.subr.mxu0 0.0
    %954 = vmatpush1.msra.mxu0 0.0
    %955 = vmatprep.subr.mxu0 0.0
    %956 = vmatpush1.msra.mxu0 0.0
    %957 = vmatprep.subr.mxu0 0.0
    %958 = vmatpush1.msra.mxu0 0.0
    %959 = vmatprep.subr.mxu0 0.0
    %960 = vmatpush1.msra.mxu0 0.0
    %961 = vmatprep.subr.mxu0 0.0
    %962 = vmatpush1.msra.mxu0 0.0
    %963 = vmatprep.mubr.f32.mxu0 0.0
    %964 = vmatmul.mubr.f32.gmra.mrb[0].mxu0 %v897
    %v965 = vpop.f32.mrb[0].mxu0
    %v966 = vadd.f32 0.0, %v965
    %v967 = vpop.f32.mrb[0].mxu0
    %968 = vdwg.mxu0
    %v973 = vrot.slane %v788, 7
    %v974 = vsel %vm448, %v973, %v699
    %v975 = vrot.slane %v877, 6
    %v976 = vsel %vm450, %v975, %v974
    %v977 = vrot.slane %v966, 5
    %v978 = vsel %vm452, %v977, %v976
    %980 = vst [vmem:[#allocation11] sm:$0xf] %v978
    // Predicated region
    $region38: #{attended_state_forward.1} parent=1 // pred_check
      _
    $region39: #{attended_state_forward.1} parent=1 // pred_check_branch
      %982 = sbr.rel (0) target = $region41
    $region40: #{attended_state_forward.1} parent=1 // pred_region
      %s984 = ssub.s32 64, 64
      %985 = vsyncadd [#allocation5], %s984
      %s987 = sshll.u32 [#allocation11], 4
      %s988 = int_to_ptr.vmem [resolvable:$true] %s987
      %990 = dma.vmem_to_hbm [thread:$0]  %s988, 64, %s5, [#allocation5]
    $region41: #{attended_state_forward.1} parent=1 // pred_fallthru
      _
    // Predicated region
    $region42: #{attended_state_forward.1} parent=1 // pred_check
      _
    $region43: #{attended_state_forward.1} parent=1 // pred_check_branch
      %992 = sbr.rel (0) target = $region45
    $region44: #{attended_state_forward.1} parent=1 // pred_region
      %993 = dma.done [#allocation5], 64
    $region45: #{attended_state_forward.1} parent=1 // pred_fallthru
      _
    %994 = vsyncpa [#allocation4], 1
    %995 = vsyncpa [#allocation7], 1
    %996 = vsyncpa [#allocation10], 1
    %997 = vsyncpa [#allocation5], 1

</llo_original>
